<compile_context>
chip_gen: v6e
topology: v6e:2x2x1
jax: 0.10.0
libtpu: 0.0.40
codegen_flags: <defaults>
</compile_context>

<pallas_src>
import math
import functools

import jax
import jax.numpy as jnp
from jax.experimental import pallas as pl
from jax.experimental.pallas import tpu as pltpu


# ----------------------------------------------------------------------------
# pe buffer construction (same math as the torch __init__, plain JAX glue)
# ----------------------------------------------------------------------------
def make_pe(max_len: int, d_model: int) -> jnp.ndarray:
    position = jnp.arange(0, max_len, dtype=jnp.float32)[:, None]             # (L, 1)
    div_term = jnp.exp(
        jnp.arange(0, d_model, 2, dtype=jnp.float32) * (-math.log(10000.0) / d_model)
    )                                                                          # (D/2,)
    ang = position * div_term                                                  # (L, D/2)
    pe = jnp.zeros((max_len, d_model), dtype=jnp.float32)
    pe = pe.at[:, 0::2].set(jnp.sin(ang))
    pe = pe.at[:, 1::2].set(jnp.cos(ang))
    return pe[:, None, :]                                                      # (L, 1, D)


# ----------------------------------------------------------------------------
# Pallas kernels (operate on lane-dense 2D blocks)
# ----------------------------------------------------------------------------
def _pe_add_kernel(x_ref, pe_ref, o_ref, *, batch: int):
    # x: (TS, B*D), pe: (TS, D) -> tile pe along the lane dim over batch
    pe_t = jnp.tile(pe_ref[...], (1, batch))          # (TS, B*D)
    o_ref[...] = x_ref[...] + pe_t


def _pe_add_dropout_kernel(x_ref, pe_ref, bits_ref, o_ref, *,
                           batch: int, threshold: int, inv_keep: float):
    # Integer-threshold Bernoulli mask: keep with prob (1 - p), scale by 1/(1-p).
    pe_t = jnp.tile(pe_ref[...], (1, batch))          # (TS, B*D)
    y = x_ref[...] + pe_t
    keep = bits_ref[...] >= jnp.uint32(threshold)
    o_ref[...] = jnp.where(keep, y * jnp.float32(inv_keep), 0.0)


# ----------------------------------------------------------------------------
# Wrapper
# ----------------------------------------------------------------------------
def positional_encoding(x, pe, *, p_drop=0.1, training=False, rng_key=None,
                        donate_x=False):
    """x: (S, B, D) float32; pe: (max_len, 1, D) (or (max_len, D)) float32."""
    S, B, D = x.shape
    max_len = pe.shape[0]
    assert S <= max_len, f"seq_len {S} exceeds pe max_len {max_len}"

    BD = B * D
    x2 = x.reshape(S, BD)                     # contiguous, free reshape
    pe2 = pe.reshape(max_len, -1)             # (max_len, D); no [:S] slice needed

    # Sequence tile: ~2 MiB per x block, multiple of 8 sublanes, capped at S.
    itemsize = jnp.dtype(x.dtype).itemsize
    target_rows = max(8, (2 * 1024 * 1024) // (BD * itemsize))
    TS = min(S, (target_rows // 8) * 8)
    if TS % 8 != 0:
        # TS == S and S not a multiple of 8: make pe's leading dim equal the
        # block so both operands satisfy the (8,128)/full-dim block rule.
        pe2 = pe2[:S]

    grid = (pl.cdiv(S, TS),)

    x_spec = pl.BlockSpec((TS, BD), lambda i: (i, 0))
    pe_spec = pl.BlockSpec((TS, D), lambda i: (i, 0))
    out_spec = pl.BlockSpec((TS, BD), lambda i: (i, 0))
    out_shape = jax.ShapeDtypeStruct((S, BD), x.dtype)

    compiler_params = pltpu.CompilerParams(
        dimension_semantics=("parallel",),        # shards across v7x's 2 TCs
        vmem_limit_bytes=32 * 1024 * 1024,        # sized against v7x scoped VMEM
    )
    extra = {"input_output_aliases": {0: 0}} if donate_x else {}

    if training and p_drop > 0.0:
        # TODO(synk): on a real TPU the mask could come from the in-kernel HW
        # PRNG (pltpu.prng_random_bits) to save one HBM read; it has no CPU /
        # interpret lowering, so bits are precomputed with jax.random instead.
        if rng_key is None:
            rng_key = jax.random.PRNGKey(0)
        bits = jax.random.bits(rng_key, (S, BD), dtype=jnp.uint32)
        threshold = min(int(round(p_drop * (2 ** 32))), 2 ** 32 - 1)
        kernel = functools.partial(
            _pe_add_dropout_kernel,
            batch=B, threshold=threshold, inv_keep=1.0 / (1.0 - p_drop),
        )
        out2 = pl.pallas_call(
            kernel,
            out_shape=out_shape,
            grid=grid,
            in_specs=[x_spec, pe_spec, x_spec],   # bits has the same layout as x
            out_specs=out_spec,
            compiler_params=compiler_params,
            **extra,
        )(x2, pe2, bits)
    else:
        # eval mode: dropout is identity
        out2 = pl.pallas_call(
            functools.partial(_pe_add_kernel, batch=B),
            out_shape=out_shape,
            grid=grid,
            in_specs=[x_spec, pe_spec],
            out_specs=out_spec,
            compiler_params=compiler_params,
            **extra,
        )(x2, pe2)

    return out2.reshape(S, B, D)


# ----------------------------------------------------------------------------
# main
# ----------------------------------------------------------------------------
if __name__ == "__main__":
    SEQ, BATCH, D_MODEL = 8, 2, 32
    MAX_LEN = 5000
    P_DROP = 0.1

    key = jax.random.PRNGKey(0)
    x = jax.random.normal(key, (SEQ, BATCH, D_MODEL), dtype=jnp.float32)

    pe = make_pe(MAX_LEN, D_MODEL)

    # eval-mode forward (dropout = identity), matches torch module in .eval()
    out = positional_encoding(x, pe, p_drop=P_DROP, training=False)
    out = jax.block_until_ready(out)

    ref = x + pe[:SEQ]
    assert out.shape == (SEQ, BATCH, D_MODEL)
    assert jnp.allclose(out, ref, atol=1e-6, rtol=1e-6)

    # training-mode (stochastic dropout) kernel: every element is either 0 or
    # (x + pe) / (1 - p)
    out_train = positional_encoding(
        x, pe, p_drop=P_DROP, training=True, rng_key=jax.random.PRNGKey(42)
    )
    out_train = jax.block_until_ready(out_train)
    assert out_train.shape == (SEQ, BATCH, D_MODEL)
    scaled_ref = ref / (1.0 - P_DROP)
    ok = jnp.logical_or(
        jnp.isclose(out_train, 0.0, atol=1e-6),
        jnp.isclose(out_train, scaled_ref, atol=1e-5, rtol=1e-5),
    )
    assert bool(jnp.all(ok))

    print("KERNEL_OK")
</pallas_src>

<mosaic_0001>
module attributes {stable_mosaic.version = 11 : i64} {
  func.func @_pe_add_kernel(%arg0: i32, %arg1: memref<8x64xf32, #tpu.memory_space<vmem>>, %arg2: memref<8x32xf32, #tpu.memory_space<vmem>>, %arg3: memref<8x64xf32, #tpu.memory_space<vmem>>) attributes {dimension_semantics = [#tpu.dimension_semantics<parallel>], iteration_bounds = array<i64: 1>, scalar_prefetch = 0 : i64, scratch_operands = 0 : i64, tpu.core_type = #tpu.core_type<tc>, window_params = [{transform_indices = @transform_0, window_bounds = array<i64: 8, 64>}, {transform_indices = @transform_1, window_bounds = array<i64: 8, 32>}, {transform_indices = @transform_2, window_bounds = array<i64: 8, 64>}]} {
    %c0 = arith.constant 0 : index
    %c0_0 = arith.constant 0 : index
    %0 = vector.load %arg2[%c0, %c0_0] : memref<8x32xf32, #tpu.memory_space<vmem>>, vector<8x32xf32>
    %1 = tpu.concatenate %0, %0 in 1 : vector<8x32xf32>, vector<8x32xf32> -> vector<8x64xf32>
    %c0_1 = arith.constant 0 : index
    %c0_2 = arith.constant 0 : index
    %2 = vector.load %arg1[%c0_1, %c0_2] : memref<8x64xf32, #tpu.memory_space<vmem>>, vector<8x64xf32>
    %3 = arith.addf %2, %1 : vector<8x64xf32>
    %c0_3 = arith.constant 0 : index
    %c0_4 = arith.constant 0 : index
    %4 = vector.load %arg3[%c0_3, %c0_4] : memref<8x64xf32, #tpu.memory_space<vmem>>, vector<8x64xf32>
    tpu.vector_store %arg3[%c0_3, %c0_4], %3 {strides = array<i32>} : memref<8x64xf32, #tpu.memory_space<vmem>>, vector<8x64xf32>,
    return
  }
  func.func @transform_0(%arg0: i32) -> (i32, i32) {
    %c0_i32 = arith.constant 0 : i32
    %c0_i32_0 = arith.constant 0 : i32
    return %arg0, %c0_i32 : i32, i32
  }
  func.func @transform_1(%arg0: i32) -> (i32, i32) {
    %c0_i32 = arith.constant 0 : i32
    %c0_i32_0 = arith.constant 0 : i32
    return %arg0, %c0_i32 : i32, i32
  }
  func.func @transform_2(%arg0: i32) -> (i32, i32) {
    %c0_i32 = arith.constant 0 : i32
    %c0_i32_0 = arith.constant 0 : i32
    return %arg0, %c0_i32 : i32, i32
  }
}

</mosaic_0001>

<llo_original>
// kernel: tpu_custom_call.1
$region0: #{tpu_custom_call.1}
  #allocation0 [shape = 'u32[]', space=smem, size = 0x4, offset = 0x4, fixed_abs, tag = 'smem constant byte address 0x4 - core index']
  #allocation1 [shape = 'u32[144,128]{1,0:T(1,128)}', space=vmem, size = 0x12000, scoped, tag = 'internal scratch']
  %s0 = inlined_call_operand.vmem [shape: f32[8,64], index: 0, kind: input, shape index: {}]
  %s1 = inlined_call_operand.vmem [shape: f32[5000,32], index: 1, kind: input, shape index: {}]
  %s2 = inlined_call_operand.hbm [shape: f32[8,64], index: 2, kind: output, shape index: {}]
  %s3 = sld [smem:[#allocation0]]
  $region18: #{tpu_custom_call.1} parent=0
    _
  %s5 = ssub.s32 1, %s3
  %s6 = scalar_select 0, %s5, %s3
  $region1: #{tpu_custom_call.1} parent=0
    #allocation2 [shape = 'u8[4096]{0}', space=vmem, size = 0x1000, scoped, tag = 'output window, operand 0, single buffered']
    #allocation3 [shape = 's32[1]{0}', space=sflag, size = 0x4, scoped, tag = 'scoped memory for tpu_custom_call.1']
    %7 = vsyncpa [#allocation3], 0
    // Predicated region
    $region2: #{tpu_custom_call.1} parent=1 // pred_check
      _
    $region3: #{tpu_custom_call.1} parent=1 // pred_check_branch
      %9 = sbr.rel (0) target = $region5
    $region4: #{tpu_custom_call.1} parent=1 // pred_region
      _
    $region5: #{tpu_custom_call.1} parent=1 // pred_fallthru
      _
    // Predicated region
    $region6: #{tpu_custom_call.1} parent=1 // pred_check
      _
    $region7: #{tpu_custom_call.1} parent=1 // pred_check_branch
      %11 = sbr.rel (0) target = $region9
    $region8: #{tpu_custom_call.1} parent=1 // pred_region
      _
    $region9: #{tpu_custom_call.1} parent=1 // pred_fallthru
      _
    %v12 = vld [vmem:[%s1] sm:$0xff]
    %14 = vrot.lane.b32.xlu0 %v12, 32
    %v15 = vpop.permute.xlu0 %14
    %vm17 = vcmask 261120
    %v18 = vsel %vm17, %v12, %v15
    %v19 = vld [vmem:[%s0] sm:$0xff]
    %v20 = vadd.f32 %v19, %v18
    %vm21 = vcmask 523264
    %22 = vst.msk [vmem:[#allocation2] sm:$0xff] %vm21, %v20
    // Predicated region
    $region10: #{tpu_custom_call.1} parent=1 // pred_check
      _
    $region11: #{tpu_custom_call.1} parent=1 // pred_check_branch
      %24 = sbr.rel (0) target = $region13
    $region12: #{tpu_custom_call.1} parent=1 // pred_region
      %s26 = ssub.s32 128, 128
      %27 = vsyncadd [#allocation3], %s26
      %s29 = sshll.u32 [#allocation2], 4
      %s30 = int_to_ptr.vmem [resolvable:$true] %s29
      %32 = dma.vmem_to_hbm [thread:$0]  %s30, 128, %s2, [#allocation3]
    $region13: #{tpu_custom_call.1} parent=1 // pred_fallthru
      _
    // Predicated region
    $region14: #{tpu_custom_call.1} parent=1 // pred_check
      _
    $region15: #{tpu_custom_call.1} parent=1 // pred_check_branch
      %34 = sbr.rel (0) target = $region17
    $region16: #{tpu_custom_call.1} parent=1 // pred_region
      %35 = dma.done [#allocation3], 128
    $region17: #{tpu_custom_call.1} parent=1 // pred_fallthru
      _
    %36 = vsyncpa [#allocation3], 1

</llo_original>
